<compile_context>
chip_gen: v5e
topology: v5e:2x2
jax: 0.10.0
libtpu: 0.0.40
codegen_flags: <defaults>
</compile_context>

<pallas_src>
import jax
import jax.numpy as jnp
from jax.experimental import pallas as pl
from jax.experimental.pallas import tpu as pltpu


def _round_up(x, m):
    return (x + m - 1) // m * m


def _gate_kernel(logit0_ref, doc_ref, ent_ref, mask_ref,
                 w0t_ref, b0_ref, wdoc_ref, vent_ref, out_ref):
    # logit0_ref : (B,) f32 in SMEM   doc_reps@w_rep + b0·w_ent + w_bias
    # doc_ref    : (1, tL, H)         doc_hidden_states tile (activation dtype)
    # ent_ref    : (1, tL, E)         ent_hidden_states tile (activation dtype)
    # mask_ref   : (1, tL, 1)         attention_mask_ent (activation dtype, 0/1)
    # w0t_ref    : (E, H)             w0.weight^T (activation dtype, MXU operand)
    # b0_ref     : (1, H)  f32        w0.bias
    # wdoc_ref   : (H, 1)             doc slice of w.weight (activation dtype)
    # vent_ref   : (E, 1)             w_ent @ w0.weight (activation dtype)
    # out_ref    : (1, tL, H)         output tile
    b = pl.program_id(0)

    doc = doc_ref[0]                                   # (tL, H) act dtype
    ent = ent_ref[0]                                   # (tL, E) act dtype

    # ent projection: MXU matmul with fp32 accumulation, bias folded in fp32,
    # then dropped back to the activation dtype for the blend.
    ent_proj = (jnp.dot(ent, w0t_ref[...], preferred_element_type=jnp.float32)
                + b0_ref[...]).astype(doc.dtype)       # (tL, H)

    # Gate logit: two skinny MXU matmuls + SMEM scalar; fp32 throughout.
    logit = (jnp.dot(doc, wdoc_ref[...], preferred_element_type=jnp.float32)
             + jnp.dot(ent, vent_ref[...], preferred_element_type=jnp.float32)
             + logit0_ref[b])                          # (tL, 1) f32
    # g = gate * mask; mask==0 -> g==0 -> out==doc (same as the where() select).
    g = jax.nn.sigmoid(logit).astype(doc.dtype) * mask_ref[0]   # (tL, 1)

    # out = gate*where(mask, ent_proj, doc) + (1-gate)*doc == doc + g*(ent_proj-doc)
    out_ref[0] = doc + g * (ent_proj - doc)


def kg_adaption_gate(doc_hidden_states, doc_reps, ent_hidden_states,
                     attention_mask_ent, params, *, tile_l=1024):
    """Forward pass of Kg_Adaption with adaption_type='gate'.

    doc_hidden_states : (B, L, H)  (fp32 or bf16; output keeps this dtype)
    doc_reps          : (B, H)
    ent_hidden_states : (B, L, E)
    attention_mask_ent: (B, L)  (1 = entity token)
    params: dict with 'w0_weight' (H, E), 'w0_bias' (H,),
            'w_weight' (1, 3H), 'w_bias' (1,)
    tile_l: L-tile size (rounded to a multiple of 8). 1024 amortizes the
            per-step pipeline overhead on all of v5e/v6e/v7x; VMEM budget is
            set explicitly below.
    """
    B, L, H = doc_hidden_states.shape
    E = ent_hidden_states.shape[-1]
    act_dtype = doc_hidden_states.dtype

    # ---- weight / gate-vector prep (done once by XLA, outside the kernel) ----
    w0_w = params["w0_weight"].astype(jnp.float32)                # (H, E)
    w0_t = w0_w.T.astype(act_dtype)                               # (E, H)
    b0 = params["w0_bias"].reshape(1, H).astype(jnp.float32)      # (1, H)
    w = params["w_weight"].astype(jnp.float32)                    # (1, 3H)
    w_rep = w[0, 0 * H:1 * H]                                     # (H,)
    w_doc = w[0, 1 * H:2 * H]                                     # (H,)
    w_ent = w[0, 2 * H:3 * H]                                     # (H,)
    # Per-batch gate-logit contribution: doc_reps part + ent-bias part + bias.
    logit0 = (doc_reps.astype(jnp.float32) @ w_rep
              + jnp.dot(b0[0], w_ent)
              + params["w_bias"].astype(jnp.float32)[0])          # (B,) f32
    wdoc_col = w_doc.reshape(H, 1).astype(act_dtype)              # (H, 1)
    vent_col = (w_ent @ w0_w).reshape(E, 1).astype(act_dtype)     # (E, 1)

    doc = doc_hidden_states
    ent = ent_hidden_states.astype(act_dtype)
    # Mask shipped sublane-major in the activation dtype (values are exactly 0/1).
    mask3d = attention_mask_ent.reshape(B, L, 1).astype(act_dtype)

    # ---- L tiling (no HBM padding; Pallas masks the partial last tile) -------
    tL = min(_round_up(tile_l, 8), L)
    n_l = pl.cdiv(L, tL)
    # v7x has 2 TensorCores sharded over "parallel" grid axes: make sure small
    # single-batch workloads still expose >= 2 grid steps.
    if B == 1 and n_l < 2 and L >= 16:
        tL = max(8, _round_up(pl.cdiv(L, 2), 8))
        n_l = pl.cdiv(L, tL)
    grid = (B, n_l)

    # ---- explicit VMEM budget -------------------------------------------------
    ab = jnp.dtype(act_dtype).itemsize
    est = (2 * tL * (2 * H + E + 1) * ab          # doc/ent/mask/out tiles, double-buffered
           + 2 * ((E * H + H + E) * ab + H * 4)   # weight operands (double-buffered)
           + 2 * tL * H * 4)                      # fp32 matmul-intermediate headroom
    vmem_limit = int(min(max(2 * est, 8 << 20), 64 << 20))

    out = pl.pallas_call(
        _gate_kernel,
        out_shape=jax.ShapeDtypeStruct((B, L, H), act_dtype),
        grid_spec=pltpu.PrefetchScalarGridSpec(
            num_scalar_prefetch=1,                    # logit0 -> SMEM
            grid=grid,
            in_specs=[
                pl.BlockSpec((1, tL, H), lambda b, l, s: (b, l, 0)),   # doc
                pl.BlockSpec((1, tL, E), lambda b, l, s: (b, l, 0)),   # ent
                pl.BlockSpec((1, tL, 1), lambda b, l, s: (b, l, 0)),   # mask
                pl.BlockSpec((E, H), lambda b, l, s: (0, 0)),          # w0.weight^T (resident)
                pl.BlockSpec((1, H), lambda b, l, s: (0, 0)),          # w0.bias
                pl.BlockSpec((H, 1), lambda b, l, s: (0, 0)),          # gate col: doc
                pl.BlockSpec((E, 1), lambda b, l, s: (0, 0)),          # gate col: ent (w_ent @ w0)
            ],
            out_specs=pl.BlockSpec((1, tL, H), lambda b, l, s: (b, l, 0)),
        ),
        compiler_params=pltpu.CompilerParams(
            dimension_semantics=("parallel", "parallel"),
            vmem_limit_bytes=vmem_limit),
    )(logit0, doc, ent, mask3d, w0_t, b0, wdoc_col, vent_col)

    return out


def _reference_gate(doc, rep, ent, mask, params):
    """Pure-JAX fp32 reference mirroring the PyTorch _forward_gate."""
    B, L, H = doc.shape
    ent_p = ent @ params["w0_weight"].T + params["w0_bias"]
    rep_r = jnp.broadcast_to(rep[:, None, :], (B, L, H))
    feat = jnp.concatenate([rep_r, doc, ent_p], axis=-1)
    gate = jax.nn.sigmoid(feat @ params["w_weight"].T + params["w_bias"])
    ent_sel = jnp.where((mask != 0)[..., None], ent_p, doc)
    return gate * ent_sel + (1.0 - gate) * doc


if __name__ == "__main__":
    # Small shapes: batch=2, max_doc_len=8, hidden_dim=32, ent_hidden_dim=16
    B, L, H, E = 2, 8, 32, 16

    key = jax.random.PRNGKey(0)
    keys = jax.random.split(key, 8)

    doc_hidden_states = jax.random.normal(keys[0], (B, L, H), jnp.float32)
    doc_reps = jax.random.normal(keys[1], (B, H), jnp.float32)
    ent_hidden_states = jax.random.normal(keys[2], (B, L, E), jnp.float32)
    attention_mask_ent = (jax.random.uniform(keys[3], (B, L)) > 0.5).astype(jnp.int32)

    # Deterministic parameter init (synthetic; no checkpoint load).
    params = {
        "w0_weight": 0.1 * jax.random.normal(keys[4], (H, E), jnp.float32),
        "w0_bias": 0.1 * jax.random.normal(keys[5], (H,), jnp.float32),
        "w_weight": 0.1 * jax.random.normal(keys[6], (1, 3 * H), jnp.float32),
        "w_bias": 0.1 * jax.random.normal(keys[7], (1,), jnp.float32),
    }

    ref = _reference_gate(doc_hidden_states, doc_reps, ent_hidden_states,
                          attention_mask_ent, params)

    # fp32 run: tight check against the reference.
    out = kg_adaption_gate(doc_hidden_states, doc_reps, ent_hidden_states,
                           attention_mask_ent, params)
    out = jax.block_until_ready(out)
    assert out.shape == (B, L, H)
    assert out.dtype == jnp.float32
    assert jnp.allclose(out, ref, atol=2e-5, rtol=2e-5), "fp32 mismatch vs reference"

    # bf16 run: activations/weights/mask/output stay bf16 (the memory-bound
    # fast path); matmul accumulation, logit and sigmoid remain fp32 in-kernel.
    # NOTE: w0/w gate weights are intentionally downcast to bf16 on this path.
    out_bf16 = kg_adaption_gate(doc_hidden_states.astype(jnp.bfloat16), doc_reps,
                                ent_hidden_states.astype(jnp.bfloat16),
                                attention_mask_ent, params)
    out_bf16 = jax.block_until_ready(out_bf16)
    assert out_bf16.dtype == jnp.bfloat16
    assert jnp.allclose(out_bf16.astype(jnp.float32), ref, atol=1e-1, rtol=1e-1), \
        "bf16 mismatch vs reference"

    # TODO(synk): the non-'gate' branch (stack of adaption_layer multi-head
    # attention blocks, with dropout) and the kg_align_loss head are not
    # exercised by the default forward path and are not implemented here.
    print("KERNEL_OK")
</pallas_src>

<mosaic_0001>
module attributes {stable_mosaic.version = 11 : i64} {
  func.func @_gate_kernel(%arg0: i32, %arg1: i32, %arg2: memref<2xf32, #tpu.memory_space<smem>>, %arg3: memref<1x8x32xf32, #tpu.memory_space<vmem>>, %arg4: memref<1x8x16xf32, #tpu.memory_space<vmem>>, %arg5: memref<1x8x1xf32, #tpu.memory_space<vmem>>, %arg6: memref<16x32xf32, #tpu.memory_space<vmem>>, %arg7: memref<1x32xf32, #tpu.memory_space<vmem>>, %arg8: memref<32x1xf32, #tpu.memory_space<vmem>>, %arg9: memref<16x1xf32, #tpu.memory_space<vmem>>, %arg10: memref<1x8x32xf32, #tpu.memory_space<vmem>>) attributes {dimension_semantics = [#tpu.dimension_semantics<parallel>, #tpu.dimension_semantics<parallel>], iteration_bounds = array<i64: 2, 1>, scalar_prefetch = 1 : i64, scratch_operands = 0 : i64, tpu.core_type = #tpu.core_type<tc>, window_params = [{transform_indices = @transform_0, window_bounds = array<i64: 1, 8, 32>}, {transform_indices = @transform_1, window_bounds = array<i64: 1, 8, 16>}, {transform_indices = @transform_2, window_bounds = array<i64: 1, 8, 1>}, {pipeline_mode = #tpu.pipeline_mode<synchronous>, transform_indices = @transform_3, window_bounds = array<i64: 16, 32>}, {pipeline_mode = #tpu.pipeline_mode<synchronous>, transform_indices = @transform_4, window_bounds = array<i64: 1, 32>}, {pipeline_mode = #tpu.pipeline_mode<synchronous>, transform_indices = @transform_5, window_bounds = array<i64: 32, 1>}, {pipeline_mode = #tpu.pipeline_mode<synchronous>, transform_indices = @transform_6, window_bounds = array<i64: 16, 1>}, {transform_indices = @transform_7, window_bounds = array<i64: 1, 8, 32>}]} {
    %c0 = arith.constant 0 : index
    %c0_0 = arith.constant 0 : index
    %c0_1 = arith.constant 0 : index
    %0 = vector.load %arg3[%c0, %c0_0, %c0_1] : memref<1x8x32xf32, #tpu.memory_space<vmem>>, vector<1x8x32xf32>
    %1 = vector.shape_cast %0 : vector<1x8x32xf32> to vector<8x32xf32>
    %c0_2 = arith.constant 0 : index
    %c0_3 = arith.constant 0 : index
    %c0_4 = arith.constant 0 : index
    %2 = vector.load %arg4[%c0_2, %c0_3, %c0_4] : memref<1x8x16xf32, #tpu.memory_space<vmem>>, vector<1x8x16xf32>
    %3 = vector.shape_cast %2 : vector<1x8x16xf32> to vector<8x16xf32>
    %c0_5 = arith.constant 0 : index
    %c0_6 = arith.constant 0 : index
    %4 = vector.load %arg6[%c0_5, %c0_6] : memref<16x32xf32, #tpu.memory_space<vmem>>, vector<16x32xf32>
    %cst = arith.constant dense<0.000000e+00> : vector<8x32xf32>
    %5 = tpu.matmul %3, %4, %cst {dimension_numbers = #tpu.dot_dimension_numbers<[1], [0], [0], [1], [0, 0, 1, 1], [], []>} : vector<8x16xf32>, vector<16x32xf32>, vector<8x32xf32> -> vector<8x32xf32>
    %c0_7 = arith.constant 0 : index
    %c0_8 = arith.constant 0 : index
    %6 = vector.load %arg7[%c0_7, %c0_8] : memref<1x32xf32, #tpu.memory_space<vmem>>, vector<1x32xf32>
    %7 = vector.broadcast %6 : vector<1x32xf32> to vector<8x32xf32>
    %8 = arith.addf %5, %7 : vector<8x32xf32>
    %c0_9 = arith.constant 0 : index
    %c0_10 = arith.constant 0 : index
    %9 = vector.load %arg8[%c0_9, %c0_10] : memref<32x1xf32, #tpu.memory_space<vmem>>, vector<32x1xf32>
    %cst_11 = arith.constant dense<0.000000e+00> : vector<8x1xf32>
    %10 = tpu.matmul %1, %9, %cst_11 {dimension_numbers = #tpu.dot_dimension_numbers<[1], [0], [0], [1], [0, 0, 1, 1], [], []>} : vector<8x32xf32>, vector<32x1xf32>, vector<8x1xf32> -> vector<8x1xf32>
    %c0_12 = arith.constant 0 : index
    %c0_13 = arith.constant 0 : index
    %11 = vector.load %arg9[%c0_12, %c0_13] : memref<16x1xf32, #tpu.memory_space<vmem>>, vector<16x1xf32>
    %cst_14 = arith.constant dense<0.000000e+00> : vector<8x1xf32>
    %12 = tpu.matmul %3, %11, %cst_14 {dimension_numbers = #tpu.dot_dimension_numbers<[1], [0], [0], [1], [0, 0, 1, 1], [], []>} : vector<8x16xf32>, vector<16x1xf32>, vector<8x1xf32> -> vector<8x1xf32>
    %13 = arith.addf %10, %12 : vector<8x1xf32>
    %14 = arith.index_cast %arg0 : i32 to index
    %15 = memref.load %arg2[%14] : memref<2xf32, #tpu.memory_space<smem>>
    %16 = vector.broadcast %15 : f32 to vector<8x1xf32>
    %17 = arith.addf %13, %16 : vector<8x1xf32>
    %18 = arith.negf %17 : vector<8x1xf32>
    %19 = math.exp %18 : vector<8x1xf32>
    %cst_15 = arith.constant 1.000000e+00 : f32
    %20 = vector.broadcast %cst_15 : f32 to vector<8x1xf32>
    %21 = arith.addf %20, %19 : vector<8x1xf32>
    %22 = arith.divf %20, %21 : vector<8x1xf32>
    %c0_16 = arith.constant 0 : index
    %c0_17 = arith.constant 0 : index
    %c0_18 = arith.constant 0 : index
    %23 = vector.load %arg5[%c0_16, %c0_17, %c0_18] : memref<1x8x1xf32, #tpu.memory_space<vmem>>, vector<1x8x1xf32>
    %24 = vector.shape_cast %23 : vector<1x8x1xf32> to vector<8x1xf32>
    %25 = arith.mulf %22, %24 : vector<8x1xf32>
    %26 = arith.subf %8, %1 : vector<8x32xf32>
    %27 = vector.broadcast %25 : vector<8x1xf32> to vector<8x32xf32>
    %28 = arith.mulf %27, %26 : vector<8x32xf32>
    %29 = arith.addf %1, %28 : vector<8x32xf32>
    %c0_19 = arith.constant 0 : index
    %c0_20 = arith.constant 0 : index
    %c0_21 = arith.constant 0 : index
    %30 = vector.load %arg10[%c0_19, %c0_20, %c0_21] : memref<1x8x32xf32, #tpu.memory_space<vmem>>, vector<1x8x32xf32>
    %31 = vector.shape_cast %30 : vector<1x8x32xf32> to vector<8x32xf32>
    %32 = vector.shape_cast %29 : vector<8x32xf32> to vector<1x8x32xf32>
    tpu.vector_store %arg10[%c0_19, %c0_20, %c0_21], %32 {strides = array<i32>} : memref<1x8x32xf32, #tpu.memory_space<vmem>>, vector<1x8x32xf32>,
    return
  }
  func.func @transform_0(%arg0: i32, %arg1: i32, %arg2: memref<2xf32, #tpu.memory_space<smem>>) -> (i32, i32, i32) {
    %c0_i32 = arith.constant 0 : i32
    %c0_i32_0 = arith.constant 0 : i32
    return %arg0, %arg1, %c0_i32 : i32, i32, i32
  }
  func.func @transform_1(%arg0: i32, %arg1: i32, %arg2: memref<2xf32, #tpu.memory_space<smem>>) -> (i32, i32, i32) {
    %c0_i32 = arith.constant 0 : i32
    %c0_i32_0 = arith.constant 0 : i32
    return %arg0, %arg1, %c0_i32 : i32, i32, i32
  }
  func.func @transform_2(%arg0: i32, %arg1: i32, %arg2: memref<2xf32, #tpu.memory_space<smem>>) -> (i32, i32, i32) {
    %c0_i32 = arith.constant 0 : i32
    %c0_i32_0 = arith.constant 0 : i32
    return %arg0, %arg1, %c0_i32 : i32, i32, i32
  }
  func.func @transform_3(%arg0: i32, %arg1: i32, %arg2: memref<2xf32, #tpu.memory_space<smem>>) -> (i32, i32) {
    %c0_i32 = arith.constant 0 : i32
    %c0_i32_0 = arith.constant 0 : i32
    %c0_i32_1 = arith.constant 0 : i32
    return %c0_i32, %c0_i32_0 : i32, i32
  }
  func.func @transform_4(%arg0: i32, %arg1: i32, %arg2: memref<2xf32, #tpu.memory_space<smem>>) -> (i32, i32) {
    %c0_i32 = arith.constant 0 : i32
    %c0_i32_0 = arith.constant 0 : i32
    %c0_i32_1 = arith.constant 0 : i32
    return %c0_i32, %c0_i32_0 : i32, i32
  }
  func.func @transform_5(%arg0: i32, %arg1: i32, %arg2: memref<2xf32, #tpu.memory_space<smem>>) -> (i32, i32) {
    %c0_i32 = arith.constant 0 : i32
    %c0_i32_0 = arith.constant 0 : i32
    %c0_i32_1 = arith.constant 0 : i32
    return %c0_i32, %c0_i32_0 : i32, i32
  }
  func.func @transform_6(%arg0: i32, %arg1: i32, %arg2: memref<2xf32, #tpu.memory_space<smem>>) -> (i32, i32) {
    %c0_i32 = arith.constant 0 : i32
    %c0_i32_0 = arith.constant 0 : i32
    %c0_i32_1 = arith.constant 0 : i32
    return %c0_i32, %c0_i32_0 : i32, i32
  }
  func.func @transform_7(%arg0: i32, %arg1: i32, %arg2: memref<2xf32, #tpu.memory_space<smem>>) -> (i32, i32, i32) {
    %c0_i32 = arith.constant 0 : i32
    %c0_i32_0 = arith.constant 0 : i32
    return %arg0, %arg1, %c0_i32 : i32, i32, i32
  }
}

</mosaic_0001>

<llo_original>
// kernel: tpu_custom_call.1
$region0: #{tpu_custom_call.1}
  #allocation0 [shape = 'u32[]', space=smem, size = 0x4, offset = 0x4, fixed_abs, tag = 'smem constant byte address 0x4 - core index']
  #allocation1 [shape = 'u32[72,128]{1,0:T(1,128)}', space=vmem, size = 0x9000, scoped, tag = 'internal scratch']
  #allocation2 [shape = 's32[1]{0}', space=sflag, size = 0x4, scoped, tag = 'scoped memory for tpu_custom_call.1']
  #allocation3 [shape = 'u8[512]{0}', space=smem, size = 0x200, scoped, tag = 'prefetched SMEM operand 0']
  %s0 = inlined_call_operand.vmem [shape: f32[2], index: 0, kind: input, shape index: {}]
  %s1 = inlined_call_operand.vmem [shape: f32[2,8,32], index: 1, kind: input, shape index: {}]
  %s2 = inlined_call_operand.vmem [shape: f32[2,8,16], index: 2, kind: input, shape index: {}]
  %s3 = inlined_call_operand.vmem [shape: f32[2,8,1], index: 3, kind: input, shape index: {}]
  %s4 = inlined_call_operand.vmem [shape: f32[16,32], index: 4, kind: input, shape index: {}]
  %s5 = inlined_call_operand.vmem [shape: f32[1,32], index: 5, kind: input, shape index: {}]
  %s6 = inlined_call_operand.vmem [shape: f32[32,1], index: 6, kind: input, shape index: {}]
  %s7 = inlined_call_operand.vmem [shape: f32[16,1], index: 7, kind: input, shape index: {}]
  %s8 = inlined_call_operand.hbm [shape: f32[2,8,32], index: 8, kind: output, shape index: {}]
  %s9 = sld [smem:[#allocation0]]
  $region61: #{tpu_custom_call.1} parent=0
    _
  %s11 = ssub.s32 1, %s9
  %s12 = scalar_select 0, %s11, %s9
  %s14 = sshll.u32 %s0, 4
  %s15 = int_to_ptr.vmem [resolvable:$true] %s14
  %17 = dma.vmem_to_smem %s15, 16, [#allocation3], [#allocation2]
  %19 = dma.done [#allocation2], 16
  %20 = sfence
  $region1: #{tpu_custom_call.1} parent=0
    #allocation4 [shape = 'u8[8192]{0}', space=vmem, size = 0x2000, scoped, tag = 'output window, operand 0']
    #allocation5 [shape = 's32[2]{0}', space=sflag, size = 0x8, scoped, tag = 'scoped memory for tpu_custom_call.1']
    %21 = vsyncpa [#allocation5], 0
    %s22 = scalar_lea.sflag [#allocation5], 1
    %23 = vsyncpa %s22, 0
    loop: start=0, step=1, limit=4
    $region2: #{tpu_custom_call.1} parent=1 // loop_pre_header
      _
    $region3: #{tpu_custom_call.1} parent=1 // loop_header
      %s25 = sphi 0, %s29
      %p26 = scmp.ge.s32.totalorder %s25, 4
      %s32 = sphi 0, %s44
      %s33 = sphi 0, %s40
      %s34 = sphi 0, %s32
      %s35 = sphi 0, %s33
      %s36 = sphi 0, %s34
      %s37 = sphi 0, %s35
      %s49 = sphi 0, %s51
      %s52 = sphi 0, %s49
      %s53 = sphi 0, %s52
      %s69 = sphi 0, %s53
      %s77 = sphi 0, %s79
      %s80 = sphi 0, %s77
      %s81 = sphi 0, %s80
      %s97 = sphi 0, %s81
      %s105 = sphi 0, %s107
      %s108 = sphi 0, %s105
      %s109 = sphi 0, %s108
      %s125 = sphi 0, %s109
      %s129 = sphi 0, %s129
      %s131 = sphi 0, %s129
      %s132 = sphi 0, %s131
      %s146 = sphi 0, %s132
      %s150 = sphi 0, %s150
      %s152 = sphi 0, %s150
      %s153 = sphi 0, %s152
      %s167 = sphi 0, %s153
      %s171 = sphi 0, %s171
      %s173 = sphi 0, %s171
      %s174 = sphi 0, %s173
      %s188 = sphi 0, %s174
      %s192 = sphi 0, %s192
      %s194 = sphi 0, %s192
      %s195 = sphi 0, %s194
      %s209 = sphi 0, %s195
      %s217 = sphi 0, %s219
      %s220 = sphi 0, %s217
      %s221 = sphi 0, %s220
      %s237 = sphi 0, %s221
    $region4: #{tpu_custom_call.1} parent=1 // loop_header_branch
      %28 = sbr.rel (%p26) target = $region8
    $region5: #{tpu_custom_call.1} parent=1 // loop_body
      %s30 = ssub.s32 %s25, 1
      %s31 = ssub.s32 %s25, 2
      %s38 = sadd.s32 1, %s33
      %p39 = scmp.ge.s32.totalorder %s38, 1
      %s40 = scalar_select %p39, 0, %s38
      %s41 = sadd.s32 1, %s32
      %s42 = scalar_select %p39, %s41, %s32
      %p43 = scmp.ge.s32.totalorder %s42, 2
      %s44 = scalar_select %p43, 0, %s42
      %s45 = ssub.s32 %s32, %s44
      %s46 = ssub.s32 %s33, %s40
      %s47 = sor.u32 %s45, %s46
      %p48 = scmp.eq.s32.totalorder %s47, 0
      %s50 = sadd.s32 %s49, 1
      %s51 = scalar_select %p48, %s49, %s50
      %p54 = pneg %p48
      %p55 = scmp.eq.s32.totalorder %s25, 1
      %p56 = por %p54, %p55
      %p57 = scmp.ne.s32.totalorder %s49, %s52
      %p58 = scmp.eq.s32.totalorder %s25, 0
      %p59 = por %p57, %p58
      %p60 = scmp.ne.s32.totalorder %s49, %s52
      %p61 = scmp.eq.s32.totalorder %s30, 1
      %p62 = por %p60, %p61
      %p63 = scmp.ne.s32.totalorder %s52, %s53
      %p64 = scmp.eq.s32.totalorder %s30, 0
      %p65 = por %p63, %p64
      %p66 = scmp.ne.s32.totalorder %s52, %s53
      %p67 = scmp.eq.s32.totalorder %s31, 1
      %p68 = por %p66, %p67
      %p70 = scmp.ne.s32.totalorder %s53, %s69
      %p71 = scmp.eq.s32.totalorder %s31, 0
      %p72 = por %p70, %p71
      %s73 = ssub.s32 %s32, %s44
      %s74 = ssub.s32 %s33, %s40
      %s75 = sor.u32 %s73, %s74
      %p76 = scmp.eq.s32.totalorder %s75, 0
      %s78 = sadd.s32 %s77, 1
      %s79 = scalar_select %p76, %s77, %s78
      %p82 = pneg %p76
      %p83 = scmp.eq.s32.totalorder %s25, 1
      %p84 = por %p82, %p83
      %p85 = scmp.ne.s32.totalorder %s77, %s80
      %p86 = scmp.eq.s32.totalorder %s25, 0
      %p87 = por %p85, %p86
      %p88 = scmp.ne.s32.totalorder %s77, %s80
      %p89 = scmp.eq.s32.totalorder %s30, 1
      %p90 = por %p88, %p89
      %p91 = scmp.ne.s32.totalorder %s80, %s81
      %p92 = scmp.eq.s32.totalorder %s30, 0
      %p93 = por %p91, %p92
      %p94 = scmp.ne.s32.totalorder %s80, %s81
      %p95 = scmp.eq.s32.totalorder %s31, 1
      %p96 = por %p94, %p95
      %p98 = scmp.ne.s32.totalorder %s81, %s97
      %p99 = scmp.eq.s32.totalorder %s31, 0
      %p100 = por %p98, %p99
      %s101 = ssub.s32 %s32, %s44
      %s102 = ssub.s32 %s33, %s40
      %s103 = sor.u32 %s101, %s102
      %p104 = scmp.eq.s32.totalorder %s103, 0
      %s106 = sadd.s32 %s105, 1
      %s107 = scalar_select %p104, %s105, %s106
      %p110 = pneg %p104
      %p111 = scmp.eq.s32.totalorder %s25, 1
      %p112 = por %p110, %p111
      %p113 = scmp.ne.s32.totalorder %s105, %s108
      %p114 = scmp.eq.s32.totalorder %s25, 0
      %p115 = por %p113, %p114
      %p116 = scmp.ne.s32.totalorder %s105, %s108
      %p117 = scmp.eq.s32.totalorder %s30, 1
      %p118 = por %p116, %p117
      %p119 = scmp.ne.s32.totalorder %s108, %s109
      %p120 = scmp.eq.s32.totalorder %s30, 0
      %p121 = por %p119, %p120
      %p122 = scmp.ne.s32.totalorder %s108, %s109
      %p123 = scmp.eq.s32.totalorder %s31, 1
      %p124 = por %p122, %p123
      %p126 = scmp.ne.s32.totalorder %s109, %s125
      %p127 = scmp.eq.s32.totalorder %s31, 0
      %p128 = por %p126, %p127
      %s130 = sadd.s32 %s129, 1
      %p133 = scmp.eq.s32.totalorder %s25, 1
      %p134 = scmp.ne.s32.totalorder %s129, %s131
      %p135 = scmp.eq.s32.totalorder %s25, 0
      %p136 = por %p134, %p135
      %p137 = scmp.ne.s32.totalorder %s129, %s131
      %p138 = scmp.eq.s32.totalorder %s30, 1
      %p139 = por %p137, %p138
      %p140 = scmp.ne.s32.totalorder %s131, %s132
      %p141 = scmp.eq.s32.totalorder %s30, 0
      %p142 = por %p140, %p141
      %p143 = scmp.ne.s32.totalorder %s131, %s132
      %p144 = scmp.eq.s32.totalorder %s31, 1
      %p145 = por %p143, %p144
      %p147 = scmp.ne.s32.totalorder %s132, %s146
      %p148 = scmp.eq.s32.totalorder %s31, 0
      %p149 = por %p147, %p148
      %s151 = sadd.s32 %s150, 1
      %p154 = scmp.eq.s32.totalorder %s25, 1
      %p155 = scmp.ne.s32.totalorder %s150, %s152
      %p156 = scmp.eq.s32.totalorder %s25, 0
      %p157 = por %p155, %p156
      %p158 = scmp.ne.s32.totalorder %s150, %s152
      %p159 = scmp.eq.s32.totalorder %s30, 1
      %p160 = por %p158, %p159
      %p161 = scmp.ne.s32.totalorder %s152, %s153
      %p162 = scmp.eq.s32.totalorder %s30, 0
      %p163 = por %p161, %p162
      %p164 = scmp.ne.s32.totalorder %s152, %s153
      %p165 = scmp.eq.s32.totalorder %s31, 1
      %p166 = por %p164, %p165
      %p168 = scmp.ne.s32.totalorder %s153, %s167
      %p169 = scmp.eq.s32.totalorder %s31, 0
      %p170 = por %p168, %p169
      %s172 = sadd.s32 %s171, 1
      %p175 = scmp.eq.s32.totalorder %s25, 1
      %p176 = scmp.ne.s32.totalorder %s171, %s173
      %p177 = scmp.eq.s32.totalorder %s25, 0
      %p178 = por %p176, %p177
      %p179 = scmp.ne.s32.totalorder %s171, %s173
      %p180 = scmp.eq.s32.totalorder %s30, 1
      %p181 = por %p179, %p180
      %p182 = scmp.ne.s32.totalorder %s173, %s174
      %p183 = scmp.eq.s32.totalorder %s30, 0
      %p184 = por %p182, %p183
      %p185 = scmp.ne.s32.totalorder %s173, %s174
      %p186 = scmp.eq.s32.totalorder %s31, 1
      %p187 = por %p185, %p186
      %p189 = scmp.ne.s32.totalorder %s174, %s188
      %p190 = scmp.eq.s32.totalorder %s31, 0
      %p191 = por %p189, %p190
      %s193 = sadd.s32 %s192, 1
      %p196 = scmp.eq.s32.totalorder %s25, 1
      %p197 = scmp.ne.s32.totalorder %s192, %s194
      %p198 = scmp.eq.s32.totalorder %s25, 0
      %p199 = por %p197, %p198
      %p200 = scmp.ne.s32.totalorder %s192, %s194
      %p201 = scmp.eq.s32.totalorder %s30, 1
      %p202 = por %p200, %p201
      %p203 = scmp.ne.s32.totalorder %s194, %s195
      %p204 = scmp.eq.s32.totalorder %s30, 0
      %p205 = por %p203, %p204
      %p206 = scmp.ne.s32.totalorder %s194, %s195
      %p207 = scmp.eq.s32.totalorder %s31, 1
      %p208 = por %p206, %p207
      %p210 = scmp.ne.s32.totalorder %s195, %s209
      %p211 = scmp.eq.s32.totalorder %s31, 0
      %p212 = por %p210, %p211
      %s213 = ssub.s32 %s32, %s44
      %s214 = ssub.s32 %s33, %s40
      %s215 = sor.u32 %s213, %s214
      %p216 = scmp.eq.s32.totalorder %s215, 0
      %s218 = sadd.s32 %s217, 1
      %s219 = scalar_select %p216, %s217, %s218
      %p222 = pneg %p216
      %p223 = scmp.eq.s32.totalorder %s25, 1
      %p224 = por %p222, %p223
      %p225 = scmp.ne.s32.totalorder %s217, %s220
      %p226 = scmp.eq.s32.totalorder %s25, 0
      %p227 = por %p225, %p226
      %p228 = scmp.ne.s32.totalorder %s217, %s220
      %p229 = scmp.eq.s32.totalorder %s30, 1
      %p230 = por %p228, %p229
      %p231 = scmp.ne.s32.totalorder %s220, %s221
      %p232 = scmp.eq.s32.totalorder %s30, 0
      %p233 = por %p231, %p232
      %p234 = scmp.ne.s32.totalorder %s220, %s221
      %p235 = scmp.eq.s32.totalorder %s31, 1
      %p236 = por %p234, %p235
      %p238 = scmp.ne.s32.totalorder %s221, %s237
      %p239 = scmp.eq.s32.totalorder %s31, 0
      %p240 = por %p238, %p239
      %p241 = scmp.le.s32.totalorder 1, %s25
      %p242 = scmp.lt.s32.totalorder %s25, 3
      %p243 = pnand %p241, %p242
      %p244 = pneg %p243
      // Predicated region
      $region9: #{tpu_custom_call.1} parent=5 // pred_check
        _
      $region10: #{tpu_custom_call.1} parent=5 // pred_check_branch
        %246 = sbr.rel (%p243) target = $region12
      $region11: #{tpu_custom_call.1} parent=5 // pred_region
        %s247 = ssub.s32 %s25, 1
        // Predicated region
        $region13: #{tpu_custom_call.1} parent=11 // pred_check
          %p248 = pneg %p142
        $region14: #{tpu_custom_call.1} parent=11 // pred_check_branch
          %250 = sbr.rel (%p248) target = $region16
        $region15: #{tpu_custom_call.1} parent=11 // pred_region
          _
        $region16: #{tpu_custom_call.1} parent=11 // pred_fallthru
          _
        // Predicated region
        $region17: #{tpu_custom_call.1} parent=11 // pred_check
          %p251 = pneg %p163
        $region18: #{tpu_custom_call.1} parent=11 // pred_check_branch
          %253 = sbr.rel (%p251) target = $region20
        $region19: #{tpu_custom_call.1} parent=11 // pred_region
          _
        $region20: #{tpu_custom_call.1} parent=11 // pred_fallthru
          _
        // Predicated region
        $region21: #{tpu_custom_call.1} parent=11 // pred_check
          %p254 = pneg %p184
        $region22: #{tpu_custom_call.1} parent=11 // pred_check_branch
          %256 = sbr.rel (%p254) target = $region24
        $region23: #{tpu_custom_call.1} parent=11 // pred_region
          _
        $region24: #{tpu_custom_call.1} parent=11 // pred_fallthru
          _
        // Predicated region
        $region25: #{tpu_custom_call.1} parent=11 // pred_check
          %p257 = pneg %p205
        $region26: #{tpu_custom_call.1} parent=11 // pred_check_branch
          %259 = sbr.rel (%p257) target = $region28
        $region27: #{tpu_custom_call.1} parent=11 // pred_region
          _
        $region28: #{tpu_custom_call.1} parent=11 // pred_fallthru
          _
      $region12: #{tpu_custom_call.1} parent=5 // pred_fallthru
        _
      %p260 = scmp.lt.s32.totalorder %s25, 2
      // Predicated region
      $region29: #{tpu_custom_call.1} parent=5 // pred_check
        %p261 = pneg %p260
      $region30: #{tpu_custom_call.1} parent=5 // pred_check_branch
        %263 = sbr.rel (%p261) target = $region32
      $region31: #{tpu_custom_call.1} parent=5 // pred_region
        // Predicated region
        $region33: #{tpu_custom_call.1} parent=31 // pred_check
          %p264 = pneg %p59
        $region34: #{tpu_custom_call.1} parent=31 // pred_check_branch
          %266 = sbr.rel (%p264) target = $region36
        $region35: #{tpu_custom_call.1} parent=31 // pred_region
          %p267 = scmp.lt.s32.totalorder %s32, 1
          %s268 = scalar_select %p267, %s32, 1
          %p269 = scmp.lt.s32.totalorder %s33, 0
          %s270 = scalar_select %p269, %s33, 0
          %s271 = sadd.s32 %s270, %s268
          %s272 = smul.addr %s271, 8
          %s273 = scalar_lea.vmem %s1, %s272
        $region36: #{tpu_custom_call.1} parent=31 // pred_fallthru
          _
        // Predicated region
        $region37: #{tpu_custom_call.1} parent=31 // pred_check
          %p274 = pneg %p87
        $region38: #{tpu_custom_call.1} parent=31 // pred_check_branch
          %276 = sbr.rel (%p274) target = $region40
        $region39: #{tpu_custom_call.1} parent=31 // pred_region
          %p277 = scmp.lt.s32.totalorder %s32, 1
          %s278 = scalar_select %p277, %s32, 1
          %p279 = scmp.lt.s32.totalorder %s33, 0
          %s280 = scalar_select %p279, %s33, 0
          %s281 = sadd.s32 %s280, %s278
          %s282 = smul.addr %s281, 8
          %s283 = scalar_lea.vmem %s2, %s282
        $region40: #{tpu_custom_call.1} parent=31 // pred_fallthru
          _
        // Predicated region
        $region41: #{tpu_custom_call.1} parent=31 // pred_check
          %p284 = pneg %p115
        $region42: #{tpu_custom_call.1} parent=31 // pred_check_branch
          %286 = sbr.rel (%p284) target = $region44
        $region43: #{tpu_custom_call.1} parent=31 // pred_region
          %p287 = scmp.lt.s32.totalorder %s32, 1
          %s288 = scalar_select %p287, %s32, 1
          %p289 = scmp.lt.s32.totalorder %s33, 0
          %s290 = scalar_select %p289, %s33, 0
          %s291 = sadd.s32 %s290, %s288
          %s292 = smul.addr %s291, 8
          %s293 = scalar_lea.vmem %s3, %s292
        $region44: #{tpu_custom_call.1} parent=31 // pred_fallthru
          _
      $region32: #{tpu_custom_call.1} parent=5 // pred_fallthru
        _
      %p294 = scmp.le.s32.totalorder 1, %s25
      %p295 = scmp.lt.s32.totalorder %s25, 3
      %p296 = pnand %p294, %p295
      %p297 = pneg %p296
      // Predicated region
      $region45: #{tpu_custom_call.1} parent=5 // pred_check
        _
      $region46: #{tpu_custom_call.1} parent=5 // pred_check_branch
        %299 = sbr.rel (%p296) target = $region48
      $region47: #{tpu_custom_call.1} parent=5 // pred_region
        %s300 = ssub.s32 %s25, 1
        %p301 = scmp.lt.s32.totalorder %s34, 1
        %s302 = scalar_select %p301, %s34, 1
        %p303 = scmp.lt.s32.totalorder %s35, 0
        %s304 = scalar_select %p303, %s35, 0
        %s305 = sadd.s32 %s304, %s302
        %s306 = smul.addr %s305, 8
        %s307 = scalar_lea.vmem %s1, %s306
        %p308 = pneg %p65
        %p309 = pneg %p62
        %p310 = scmp.lt.s32.totalorder %s34, 1
        %s311 = scalar_select %p310, %s34, 1
        %p312 = scmp.lt.s32.totalorder %s35, 0
        %s313 = scalar_select %p312, %s35, 0
        %s314 = sadd.s32 %s313, %s311
        %s315 = smul.addr %s314, 8
        %s316 = scalar_lea.vmem %s2, %s315
        %p317 = pneg %p93
        %p318 = pneg %p90
        %p319 = scmp.lt.s32.totalorder %s34, 1
        %s320 = scalar_select %p319, %s34, 1
        %p321 = scmp.lt.s32.totalorder %s35, 0
        %s322 = scalar_select %p321, %s35, 0
        %s323 = sadd.s32 %s322, %s320
        %s324 = smul.addr %s323, 8
        %s325 = scalar_lea.vmem %s3, %s324
        %p326 = pneg %p121
        %p327 = pneg %p118
        %p328 = pneg %p142
        %p329 = pneg %p139
        %p330 = pneg %p163
        %p331 = pneg %p160
        %p332 = pneg %p184
        %p333 = pneg %p181
        %p334 = pneg %p205
        %p335 = pneg %p202
        %p336 = pneg %p233
        %p337 = pneg %p230
        %s338 = sand.u32 %s220, 1
        %s339 = scalar_lea.sflag [#allocation5], %s338
        %s340 = sand.u32 %s220, 1
        %s341 = smul.addr %s340, 8
        %s342 = scalar_lea.vmem [#allocation4], %s341
        %p343 = scmp.lt.s32.totalorder %s34, 1
        %s344 = scalar_select %p343, %s34, 1
        %p345 = scmp.lt.s32.totalorder %s35, 0
        %s346 = scalar_select %p345, %s35, 0
        %s347 = sadd.s32 %s346, %s344
        %s348 = smul.addr %s347, 8
        %s349 = scalar_lea.vmem %s1, %s348
        %p350 = scmp.lt.s32.totalorder %s34, 1
        %s351 = scalar_select %p350, %s34, 1
        %p352 = scmp.lt.s32.totalorder %s35, 0
        %s353 = scalar_select %p352, %s35, 0
        %s354 = sadd.s32 %s353, %s351
        %s355 = smul.addr %s354, 8
        %s356 = scalar_lea.vmem %s2, %s355
        %p357 = scmp.lt.s32.totalorder %s34, 1
        %s358 = scalar_select %p357, %s34, 1
        %p359 = scmp.lt.s32.totalorder %s35, 0
        %s360 = scalar_select %p359, %s35, 0
        %s361 = sadd.s32 %s360, %s358
        %s362 = smul.addr %s361, 8
        %s363 = scalar_lea.vmem %s3, %s362
        %v364 = vld [vmem:[%s349] sm:$0xff]
        %v365 = vld [vmem:[%s356] sm:$0xff]
        %v366 = vld [vmem:[%s4] sm:$0xff]
        %v367 = vld [vmem:[%s4 + $0x8] sm:$0xff]
        %v368 = vld [vmem:[%s5] sm:$0x1]
        %v370 = vperm.slane %v368, 0
        %vm372 = vcmask 130048
        %v374 = vsel %vm372, %v365, 0
        %376 = vmatpush.msra.mxu0 0.0
        %377 = vmatpush.msra.mxu0 0.0
        %378 = vmatpush.msra.mxu0 0.0
        %379 = vmatpush.msra.mxu0 0.0
        %380 = vmatpush.msra.mxu0 0.0
        %381 = vmatpush.msra.mxu0 0.0
        %382 = vmatpush.msra.mxu0 0.0
        %383 = vmatpush.msra.mxu0 0.0
        %384 = vmatpush.msra.mxu0 0.0
        %385 = vmatpush.msra.mxu0 0.0
        %386 = vmatpush.msra.mxu0 0.0
        %387 = vmatpush.msra.mxu0 0.0
        %388 = vmatpush.msra.mxu0 0.0
        %389 = vmatpush.msra.mxu0 0.0
        %390 = vmatpush.msra.mxu0 %v367
        %391 = vmatpush.msra.mxu0 %v366
        %392 = vmatmul.f32.gmra.mxu0 %v374
        %v393 = vpop.f32.mrf.mxu0
        %v394 = vadd.f32 %v370, %v393
        %395 = vdwg.mxu0
        %v396 = vld [vmem:[%s6] sm:$0xff]
        %v397 = vld [vmem:[%s6 + $0x8] sm:$0xff]
        %v398 = vld [vmem:[%s6 + $0x10] sm:$0xff]
        %v399 = vld [vmem:[%s6 + $0x18] sm:$0xff]
        %v400 = vld [vmem:[%s7] sm:$0xff]
        %v401 = vld [vmem:[%s7 + $0x8] sm:$0xff]
        %402 = vmatpush.msra.mxu0 0.0
        %403 = vmatpush.msra.mxu0 0.0
        %404 = vmatpush.msra.mxu0 0.0
        %405 = vmatpush.msra.mxu0 0.0
        %406 = vmatpush.msra.mxu0 0.0
        %407 = vmatpush.msra.mxu0 0.0
        %408 = vmatpush.msra.mxu0 0.0
        %409 = vmatpush.msra.mxu0 0.0
        %410 = vmatpush.msra.mxu0 0.0
        %411 = vmatpush.msra.mxu0 0.0
        %412 = vmatpush.msra.mxu0 0.0
        %413 = vmatpush.msra.mxu0 0.0
        %414 = vmatpush.msra.mxu0 0.0
        %415 = vmatpush.msra.mxu0 0.0
        %416 = vmatpush.msra.mxu0 %v401
        %417 = vmatpush.msra.mxu0 %v400
        %418 = vmatmul.f32.gmra.mxu0 %v374
        %v419 = vpop.f32.mrf.mxu0
        %v420 = vadd.f32 0.0, %v419
        %421 = vdwg.mxu0
        %vm422 = vcmask 261120
        %v424 = vsel %vm422, %v364, 0
        %426 = vmatpush.msra.mxu0 0.0
        %427 = vmatpush.msra.mxu0 0.0
        %428 = vmatpush.msra.mxu0 0.0
        %429 = vmatpush.msra.mxu0 0.0
        %430 = vmatpush.msra.mxu0 0.0
        %431 = vmatpush.msra.mxu0 0.0
        %432 = vmatpush.msra.mxu0 0.0
        %433 = vmatpush.msra.mxu0 0.0
        %434 = vmatpush.msra.mxu0 0.0
        %435 = vmatpush.msra.mxu0 0.0
        %436 = vmatpush.msra.mxu0 0.0
        %437 = vmatpush.msra.mxu0 0.0
        %438 = vmatpush.msra.mxu0 %v399
        %439 = vmatpush.msra.mxu0 %v398
        %440 = vmatpush.msra.mxu0 %v397
        %441 = vmatpush.msra.mxu0 %v396
        %442 = vmatmul.f32.gmra.mxu0 %v424
        %v443 = vpop.f32.mrf.mxu0
        %v444 = vadd.f32 %v420, %v443
        %445 = vdwg.mxu0
        %s446 = sld [smem:[#allocation3 + %s34]]
        %v447 = vstv %s446
        %v448 = vadd.f32 %v444, %v447
        %v449 = vxor.u32 %v448, 2147483648
        %v450 = vmul.f32 %v449, 1.442695
        %v451 = vpow.pop %v450
        %v452 = vadd.f32 %v451, 1.0
        %v453 = vrcp.pop %v452
        %v454 = vmul.f32 %v452, %v453
        %v455 = vsub.f32 1.0, %v454
        %v456 = vmul.f32 %v453, %v455
        %v457 = vadd.f32 %v453, %v456
        %vm458 = vweird.f32 %v452
        %vm459 = vweird.f32 %v453
        %vm460 = vmor %vm458, %vm459
        %v461 = vsel %vm460, %v453, %v457
        %v462 = vand.u32 2147483647, %v452
        %vm463 = vcmp.eq.f32.partialorder %v462, 8.507059e+37
        %v464 = vand.u32 %v452, 2147483648
        %v465 = vor.u32 1.1754944e-38, %v464
        %v466 = vsel %vm463, %v465, %v461
        %v467 = vmul.f32 1.0, %v466
        %v468 = vld [vmem:[%s363] sm:$0xff]
        %v469 = vmul.f32 %v467, %v468
        %v470 = vsub.f32 %v394, %v364
        %472 = vset.pattern.permute.xlu0 0
        %473 = vperm.xlu0 %472, %v469
        %v474 = vpop.permute.xlu0 %473
        %v476 = vmul.f32 %v474, %v470
        %v477 = vadd.f32 %v364, %v476
        %478 = vst.msk [vmem:[%s342] sm:$0xff] %vm422, %v477
        %s479 = sand.u32 %s220, 1
        %s480 = scalar_lea.sflag [#allocation5], %s479
        %s481 = sand.u32 %s220, 1
        %s482 = smul.addr %s481, 8
        %s483 = scalar_lea.vmem [#allocation4], %s482
        // Predicated region
        $region49: #{tpu_custom_call.1} parent=47 // pred_check
          %p484 = pneg %p230
        $region50: #{tpu_custom_call.1} parent=47 // pred_check_branch
          %486 = sbr.rel (%p484) target = $region52
        $region51: #{tpu_custom_call.1} parent=47 // pred_region
          %488 = vsyncadd %s480, 0
          %s489 = sadd.s32 %s35, %s34
          %s490 = smul.addr %s489, 8
          %s491 = scalar_lea.hbm %s8, %s490
          %s493 = sshll.u32 %s483, 4
          %s494 = int_to_ptr.vmem [resolvable:$true] %s493
          %s495 = sshll.u32 %s491, 4
          %s496 = int_to_ptr.hbm [resolvable:$true] %s495
          %498 = dma.vmem_to_hbm [thread:$0]  %s494, 128, %s496, %s480
        $region52: #{tpu_custom_call.1} parent=47 // pred_fallthru
          _
      $region48: #{tpu_custom_call.1} parent=5 // pred_fallthru
        _
      %p499 = scmp.le.s32.totalorder 2, %s25
      // Predicated region
      $region53: #{tpu_custom_call.1} parent=5 // pred_check
        %p500 = pneg %p499
      $region54: #{tpu_custom_call.1} parent=5 // pred_check_branch
        %502 = sbr.rel (%p500) target = $region56
      $region55: #{tpu_custom_call.1} parent=5 // pred_region
        %s503 = ssub.s32 %s25, 2
        // Predicated region
        $region57: #{tpu_custom_call.1} parent=55 // pred_check
          %p504 = pneg %p236
        $region58: #{tpu_custom_call.1} parent=55 // pred_check_branch
          %506 = sbr.rel (%p504) target = $region60
        $region59: #{tpu_custom_call.1} parent=55 // pred_region
          %s507 = sand.u32 %s221, 1
          %s508 = scalar_lea.sflag [#allocation5], %s507
          %s509 = sand.u32 %s221, 1
          %s510 = smul.addr %s509, 8
          %s511 = scalar_lea.vmem [#allocation4], %s510
          %513 = dma.done %s508, 128
        $region60: #{tpu_custom_call.1} parent=55 // pred_fallthru
          _
      $region56: #{tpu_custom_call.1} parent=5 // pred_fallthru
        _
    $region6: #{tpu_custom_call.1} parent=1 // loop_footer
      %s29 = sadd.s32 1, %s25
    $region7: #{tpu_custom_call.1} parent=1 // loop_footer_branch
      %24 = sbr.rel target = $region3
    $region8: #{tpu_custom_call.1} parent=1 // loop_exit
      _
    %514 = vsyncpa [#allocation5], 1
    %s515 = scalar_lea.sflag [#allocation5], 1
    %516 = vsyncpa %s515, 1

</llo_original>
